<compile_context>
chip_gen: v7x
topology: tpu7x:2x2x1
jax: 0.10.0
libtpu: 0.0.40
codegen_flags: <defaults>
</compile_context>

<pallas_src>
import functools

import jax
import jax.numpy as jnp
import numpy as np
from jax.experimental import pallas as pl
from jax.experimental.pallas import tpu as pltpu


def _concat_conv2d_kernel(x_ref, w_ref, b_ref, o_ref, *, W, KH, KW):
    """Valid conv as a single im2col GEMM over lane-flattened samples.

    x_ref: (Cin, L)            f32, L = nb*H*W (nb samples, lane-flattened)
    w_ref: (Cout, KH*KW*Cin)   f32 im2col weight matrix (time channel removed)
    b_ref: (Cout, 1)           f32 effective bias (time channel folded in)
    o_ref: (Cout, L)           f32 full-width rows; invalid cols cropped outside
    """
    L = x_ref.shape[-1]
    xs = x_ref[...]  # (Cin, L) lane-dense load, once per grid step

    # Build the (KH*KW*Cin, L) im2col operand in VMEM.  Left-rotating lanes by
    # `off` gives shifted[:, m] = xs[:, m + off]; wrapped lanes only ever land
    # in columns the wrapper crops (valid output positions never wrap for a
    # valid conv, and sample boundaries only affect cropped columns).
    taps = []
    for kh in range(KH):
        for kw in range(KW):
            off = kh * W + kw
            if off == 0:
                taps.append(xs)
            else:
                taps.append(pltpu.roll(xs, shift=L - off, axis=1))
    rhs = jnp.concatenate(taps, axis=0)  # (KH*KW*Cin, L)

    # One MXU GEMM: (Cout, K*Cin) @ (K*Cin, L), f32 accumulate, full precision.
    acc = jnp.dot(w_ref[...], rhs,
                  preferred_element_type=jnp.float32,
                  precision=jax.lax.Precision.HIGHEST)
    # Bias added once per grid step (broadcast over lanes).
    o_ref[...] = (acc + b_ref[...]).astype(o_ref.dtype)


def concat_conv2d(t, x, weight, bias, *, nb_max=64):
    """Forward pass of ConcatConv2d (stride=1, padding=0, dilation=1, groups=1).

    t:      scalar time
    x:      (N, Cin, H, W) float32, NCHW
    weight: (Cout, Cin+1, KH, KW) float32 (PyTorch OIHW; channel 0 is the t-channel)
    bias:   (Cout,) float32
    returns (N, Cout, H-KH+1, W-KW+1) float32
    """
    N, Cin, H, W = x.shape
    Cout, Cin1, KH, KW = weight.shape
    assert Cin1 == Cin + 1, "channel 0 of weight must be the time channel"
    # The lane-rotate trick and the time-channel-into-bias fold are only valid
    # for the module's default config.
    assert KH <= H and KW <= W, "kernel larger than input not supported"
    Ho, Wo = H - KH + 1, W - KW + 1
    HW = H * W
    f32 = jnp.float32

    weight = weight.astype(f32)
    # Fold the constant time channel into the bias (exact because padding=0):
    #   conv(cat([t*ones, x]), w) = conv(x, w[:, 1:]) + t * sum_hw(w[:, 0]).
    b_eff = bias.astype(f32) + jnp.asarray(t, f32) * weight[:, 0].sum(axis=(-2, -1))
    # Single (Cout, KH*KW*Cin) im2col weight; k-ordering (kh, kw, cin) matches
    # the kernel's tap-concatenation order.
    w_mat = weight[:, 1:].transpose(0, 2, 3, 1).reshape(Cout, KH * KW * Cin)

    # Batch tile: largest divisor of N that fits nb_max -> no zero-pad and no
    # ragged block in the common case.  Single max-size block when N <= nb_max
    # (best on 1-TC v5e/v6e); multi-step cases keep the grid "parallel" so the
    # two v7x TensorCores both get work.  nb_max=64 keeps the per-step VMEM
    # footprint (~nb * 50 KiB incl. the im2col operand) far under the scoped
    # limit on every generation; raise it for large-N v7x runs if desired.
    nb = 1
    for d in range(1, min(N, nb_max) + 1):
        if N % d == 0:
            nb = d
    n_pad = N
    if nb * 4 < min(N, nb_max):
        # Pathological N (e.g. large prime): pad minimally instead of running
        # hundreds of 1-sample grid steps.
        nb = min(N, nb_max)
        n_pad = pl.cdiv(N, nb) * nb
    g = n_pad // nb
    if g > 1 and (nb * HW) % 128 != 0:
        # Lowering requires the block's lane dim to be 128-aligned unless it
        # spans the full array; fall back to a single full-width block.
        nb, n_pad, g = N, N, 1

    # Lane-flattened, channel-major layout: one layout pass over x buys a
    # single wide GEMM and maximally long unmasked lane-dense stores.
    x2d = x.astype(f32).transpose(1, 0, 2, 3).reshape(Cin, N * HW)
    if n_pad != N:
        x2d = jnp.concatenate(
            [x2d, jnp.zeros((Cin, (n_pad - N) * HW), f32)], axis=1)

    kernel = functools.partial(_concat_conv2d_kernel, W=W, KH=KH, KW=KW)
    out2d = pl.pallas_call(
        kernel,
        out_shape=jax.ShapeDtypeStruct((Cout, n_pad * HW), f32),
        grid=(g,),
        in_specs=[
            pl.BlockSpec((Cin, nb * HW), lambda i: (0, i)),              # samples
            pl.BlockSpec((Cout, KH * KW * Cin), lambda i: (0, 0)),       # weights (VMEM, resident)
            pl.BlockSpec((Cout, 1), lambda i: (0, 0)),                   # folded bias
        ],
        out_specs=pl.BlockSpec((Cout, nb * HW), lambda i: (0, i)),
        compiler_params=pltpu.CompilerParams(
            dimension_semantics=("parallel",),
            vmem_limit_bytes=32 * 1024 * 1024),
    )(x2d, w_mat, b_eff.reshape(Cout, 1))

    # Full-width slab -> NCHW valid window; transpose + crop fuse into one copy.
    return out2d.reshape(Cout, n_pad, H, W).transpose(1, 0, 2, 3)[:N, :, :Ho, :Wo]


if __name__ == "__main__":
    key = jax.random.PRNGKey(0)
    kx, kw, kb = jax.random.split(key, 3)

    # ConcatConv2d(dim_in=4, dim_out=8, ksize=3, stride=1, padding=0, bias=True)
    N, Cin, H, W = 2, 4, 16, 16
    Cout, ksize = 8, 3

    x = jax.random.normal(kx, (N, Cin, H, W), dtype=jnp.float32)
    fan_in = (Cin + 1) * ksize * ksize
    bound = 1.0 / np.sqrt(fan_in)
    weight = jax.random.uniform(kw, (Cout, Cin + 1, ksize, ksize),
                                minval=-bound, maxval=bound, dtype=jnp.float32)
    bias = jax.random.uniform(kb, (Cout,), minval=-bound, maxval=bound,
                              dtype=jnp.float32)
    t = jnp.float32(0.5)

    out = jax.block_until_ready(concat_conv2d(t, x, weight, bias))
    assert out.shape == (N, Cout, H - ksize + 1, W - ksize + 1)

    # Pure-JAX reference (high precision) for a correctness check.
    tt = jnp.full((N, 1, H, W), t, dtype=x.dtype)
    ttx = jnp.concatenate([tt, x], axis=1)
    ref = jax.lax.conv_general_dilated(
        ttx, weight, window_strides=(1, 1), padding="VALID",
        dimension_numbers=("NCHW", "OIHW", "NCHW"),
        precision=jax.lax.Precision.HIGHEST) + bias[None, :, None, None]
    # Kernel uses precision=HIGHEST in the MXU GEMM, so tight tolerance holds.
    np.testing.assert_allclose(np.asarray(out), np.asarray(ref),
                               rtol=1e-4, atol=1e-4)

    print("KERNEL_OK")
</pallas_src>

<mosaic_0001>
module attributes {stable_mosaic.version = 11 : i64} {
  func.func @_concat_conv2d_kernel(%arg0: i32, %arg1: memref<4x512xf32, #tpu.memory_space<vmem>>, %arg2: memref<8x36xf32, #tpu.memory_space<vmem>>, %arg3: memref<8x1xf32, #tpu.memory_space<vmem>>, %arg4: memref<8x512xf32, #tpu.memory_space<vmem>>) attributes {dimension_semantics = [#tpu.dimension_semantics<parallel>], iteration_bounds = array<i64: 1>, scalar_prefetch = 0 : i64, scratch_operands = 0 : i64, tpu.core_type = #tpu.core_type<tc>, window_params = [{transform_indices = @transform_0, window_bounds = array<i64: 4, 512>}, {pipeline_mode = #tpu.pipeline_mode<synchronous>, transform_indices = @transform_1, window_bounds = array<i64: 8, 36>}, {pipeline_mode = #tpu.pipeline_mode<synchronous>, transform_indices = @transform_2, window_bounds = array<i64: 8, 1>}, {transform_indices = @transform_3, window_bounds = array<i64: 8, 512>}]} {
    %c0 = arith.constant 0 : index
    %c0_0 = arith.constant 0 : index
    %0 = vector.load %arg1[%c0, %c0_0] : memref<4x512xf32, #tpu.memory_space<vmem>>, vector<4x512xf32>
    %c511_i32 = arith.constant 511 : i32
    %1 = tpu.dynamic_rotate %0 by %c511_i32 dim 1 : vector<4x512xf32>, i32 -> vector<4x512xf32>
    %c510_i32 = arith.constant 510 : i32
    %2 = tpu.dynamic_rotate %0 by %c510_i32 dim 1 : vector<4x512xf32>, i32 -> vector<4x512xf32>
    %c496_i32 = arith.constant 496 : i32
    %3 = tpu.dynamic_rotate %0 by %c496_i32 dim 1 : vector<4x512xf32>, i32 -> vector<4x512xf32>
    %c495_i32 = arith.constant 495 : i32
    %4 = tpu.dynamic_rotate %0 by %c495_i32 dim 1 : vector<4x512xf32>, i32 -> vector<4x512xf32>
    %c494_i32 = arith.constant 494 : i32
    %5 = tpu.dynamic_rotate %0 by %c494_i32 dim 1 : vector<4x512xf32>, i32 -> vector<4x512xf32>
    %c480_i32 = arith.constant 480 : i32
    %6 = tpu.dynamic_rotate %0 by %c480_i32 dim 1 : vector<4x512xf32>, i32 -> vector<4x512xf32>
    %c479_i32 = arith.constant 479 : i32
    %7 = tpu.dynamic_rotate %0 by %c479_i32 dim 1 : vector<4x512xf32>, i32 -> vector<4x512xf32>
    %c478_i32 = arith.constant 478 : i32
    %8 = tpu.dynamic_rotate %0 by %c478_i32 dim 1 : vector<4x512xf32>, i32 -> vector<4x512xf32>
    %9 = tpu.concatenate %0, %1, %2, %3, %4, %5, %6, %7, %8 in 0 : vector<4x512xf32>, vector<4x512xf32>, vector<4x512xf32>, vector<4x512xf32>, vector<4x512xf32>, vector<4x512xf32>, vector<4x512xf32>, vector<4x512xf32>, vector<4x512xf32> -> vector<36x512xf32>
    %c0_1 = arith.constant 0 : index
    %c0_2 = arith.constant 0 : index
    %10 = vector.load %arg2[%c0_1, %c0_2] : memref<8x36xf32, #tpu.memory_space<vmem>>, vector<8x36xf32>
    %cst = arith.constant dense<0.000000e+00> : vector<8x512xf32>
    %11 = tpu.matmul %10, %9, %cst {dimension_numbers = #tpu.dot_dimension_numbers<[1], [0], [0], [1], [0, 0, 1, 1], [], []>, precision = #tpu.contract_precision<fp32>} : vector<8x36xf32>, vector<36x512xf32>, vector<8x512xf32> -> vector<8x512xf32>
    %c0_3 = arith.constant 0 : index
    %c0_4 = arith.constant 0 : index
    %12 = vector.load %arg3[%c0_3, %c0_4] : memref<8x1xf32, #tpu.memory_space<vmem>>, vector<8x1xf32>
    %13 = vector.broadcast %12 : vector<8x1xf32> to vector<8x512xf32>
    %14 = arith.addf %11, %13 : vector<8x512xf32>
    %c0_5 = arith.constant 0 : index
    %c0_6 = arith.constant 0 : index
    %15 = vector.load %arg4[%c0_5, %c0_6] : memref<8x512xf32, #tpu.memory_space<vmem>>, vector<8x512xf32>
    tpu.vector_store %arg4[%c0_5, %c0_6], %14 {strides = array<i32>} : memref<8x512xf32, #tpu.memory_space<vmem>>, vector<8x512xf32>,
    return
  }
  func.func @transform_0(%arg0: i32) -> (i32, i32) {
    %c0_i32 = arith.constant 0 : i32
    %c0_i32_0 = arith.constant 0 : i32
    return %c0_i32, %arg0 : i32, i32
  }
  func.func @transform_1(%arg0: i32) -> (i32, i32) {
    %c0_i32 = arith.constant 0 : i32
    %c0_i32_0 = arith.constant 0 : i32
    %c0_i32_1 = arith.constant 0 : i32
    return %c0_i32, %c0_i32_0 : i32, i32
  }
  func.func @transform_2(%arg0: i32) -> (i32, i32) {
    %c0_i32 = arith.constant 0 : i32
    %c0_i32_0 = arith.constant 0 : i32
    %c0_i32_1 = arith.constant 0 : i32
    return %c0_i32, %c0_i32_0 : i32, i32
  }
  func.func @transform_3(%arg0: i32) -> (i32, i32) {
    %c0_i32 = arith.constant 0 : i32
    %c0_i32_0 = arith.constant 0 : i32
    return %c0_i32, %arg0 : i32, i32
  }
}

</mosaic_0001>

<llo_original>
// kernel: tpu_custom_call.1
$region0: #{tpu_custom_call.1}
  #allocation0 [shape = 'u32[]', space=smem, size = 0x4, offset = 0x4, fixed_abs, tag = 'smem constant byte address 0x4 - core index']
  #allocation1 [shape = 'u32[144,128]{1,0:T(1,128)}', space=vmem, size = 0x12000, scoped, tag = 'internal scratch']
  %s0 = inlined_call_operand.hbm [shape: f32[4,512], index: 0, kind: input, shape index: {}]
  %s1 = inlined_call_operand.vmem [shape: f32[8,36], index: 1, kind: input, shape index: {}]
  %s2 = inlined_call_operand.vmem [shape: f32[8,1], index: 2, kind: input, shape index: {}]
  %s3 = inlined_call_operand.hbm [shape: f32[8,512], index: 3, kind: output, shape index: {}]
  %s4 = sld [smem:[#allocation0]]
  $region26: #{tpu_custom_call.1} parent=0
    _
  %s6 = ssub.s32 1, %s4
  %s7 = scalar_select 0, %s6, %s4
  $region1: #{tpu_custom_call.1} parent=0
    #allocation2 [shape = 'u8[8192]{0}', space=vmem, size = 0x2000, scoped, tag = 'input window, operand 0, single buffered']
    #allocation3 [shape = 's32[1]{0}', space=sflag, size = 0x4, scoped, tag = 'scoped memory for tpu_custom_call.1']
    #allocation4 [shape = 's32[1]{0}', space=sflag, size = 0x4, scoped, tag = 'scoped memory for tpu_custom_call.1']
    #allocation5 [shape = 'u8[16384]{0}', space=vmem, size = 0x4000, scoped, tag = 'output window, operand 0, single buffered']
    %8 = vsyncpa [#allocation3], 0
    %9 = vsyncpa [#allocation4], 0
    // Predicated region
    $region2: #{tpu_custom_call.1} parent=1 // pred_check
      _
    $region3: #{tpu_custom_call.1} parent=1 // pred_check_branch
      %11 = sbr.rel (0) target = $region5
    $region4: #{tpu_custom_call.1} parent=1 // pred_region
      %s13 = ssub.s32 256, 256
      %14 = vsyncadd [#allocation3], %s13
      %s16 = sshll.u32 [#allocation2], 4
      %s17 = int_to_ptr.vmem [resolvable:$true] %s16
      %19 = dma.hbm_to_vmem [thread:$0]  %s0, 256, %s17, [#allocation3]
    $region5: #{tpu_custom_call.1} parent=1 // pred_fallthru
      _
    // Predicated region
    $region6: #{tpu_custom_call.1} parent=1 // pred_check
      _
    $region7: #{tpu_custom_call.1} parent=1 // pred_check_branch
      %21 = sbr.rel (0) target = $region9
    $region8: #{tpu_custom_call.1} parent=1 // pred_region
      _
    $region9: #{tpu_custom_call.1} parent=1 // pred_fallthru
      _
    // Predicated region
    $region10: #{tpu_custom_call.1} parent=1 // pred_check
      _
    $region11: #{tpu_custom_call.1} parent=1 // pred_check_branch
      %23 = sbr.rel (0) target = $region13
    $region12: #{tpu_custom_call.1} parent=1 // pred_region
      _
    $region13: #{tpu_custom_call.1} parent=1 // pred_fallthru
      _
    // Predicated region
    $region14: #{tpu_custom_call.1} parent=1 // pred_check
      _
    $region15: #{tpu_custom_call.1} parent=1 // pred_check_branch
      %25 = sbr.rel (0) target = $region17
    $region16: #{tpu_custom_call.1} parent=1 // pred_region
      %26 = dma.done [#allocation3], 256
    $region17: #{tpu_custom_call.1} parent=1 // pred_fallthru
      _
    %v27 = vld [vmem:[#allocation2] sm:$0xff]
    %v28 = vld [vmem:[#allocation2 + $0x8] sm:$0xff]
    %v31 = vcombine.high %v27, %v27
    %v32 = vcombine.high %v28, %v28
    %35 = vrot.lane.b32.xlu0 %v27, 127
    %v36 = vpop.permute.xlu0 %35
    %37 = vrot.lane.b32.xlu0 %v31, 127
    %v38 = vpop.permute.xlu0 %37
    %39 = vrot.lane.b32.xlu0 %v28, 127
    %v40 = vpop.permute.xlu0 %39
    %41 = vrot.lane.b32.xlu0 %v32, 127
    %v42 = vpop.permute.xlu0 %41
    %v43 = vlaneseq
    %v44 = vand.u32 %v43, 127
    %vm45 = vcmp.lt.s32.totalorder %v44, 127
    %v46 = vsel %vm45, %v40, %v42
    %v47 = vsel %vm45, %v38, %v40
    %v48 = vsel %vm45, %v36, %v38
    %v49 = vsel %vm45, %v42, %v36
    %50 = vrot.lane.b32.xlu0 %v27, 126
    %v51 = vpop.permute.xlu0 %50
    %52 = vrot.lane.b32.xlu0 %v31, 126
    %v53 = vpop.permute.xlu0 %52
    %54 = vrot.lane.b32.xlu0 %v28, 126
    %v55 = vpop.permute.xlu0 %54
    %56 = vrot.lane.b32.xlu0 %v32, 126
    %v57 = vpop.permute.xlu0 %56
    %vm58 = vcmp.lt.s32.totalorder %v44, 126
    %v59 = vsel %vm58, %v55, %v57
    %v60 = vsel %vm58, %v53, %v55
    %v61 = vsel %vm58, %v51, %v53
    %v62 = vsel %vm58, %v57, %v51
    %63 = vrot.lane.b32.xlu0 %v27, 112
    %v64 = vpop.permute.xlu0 %63
    %65 = vrot.lane.b32.xlu0 %v31, 112
    %v66 = vpop.permute.xlu0 %65
    %67 = vrot.lane.b32.xlu0 %v28, 112
    %v68 = vpop.permute.xlu0 %67
    %69 = vrot.lane.b32.xlu0 %v32, 112
    %v70 = vpop.permute.xlu0 %69
    %vm71 = vcmp.lt.s32.totalorder %v44, 112
    %v72 = vsel %vm71, %v68, %v70
    %v73 = vsel %vm71, %v66, %v68
    %v74 = vsel %vm71, %v64, %v66
    %v75 = vsel %vm71, %v70, %v64
    %76 = vrot.lane.b32.xlu0 %v27, 111
    %v77 = vpop.permute.xlu0 %76
    %78 = vrot.lane.b32.xlu0 %v31, 111
    %v79 = vpop.permute.xlu0 %78
    %80 = vrot.lane.b32.xlu0 %v28, 111
    %v81 = vpop.permute.xlu0 %80
    %82 = vrot.lane.b32.xlu0 %v32, 111
    %v83 = vpop.permute.xlu0 %82
    %vm84 = vcmp.lt.s32.totalorder %v44, 111
    %v85 = vsel %vm84, %v81, %v83
    %v86 = vsel %vm84, %v79, %v81
    %v87 = vsel %vm84, %v77, %v79
    %v88 = vsel %vm84, %v83, %v77
    %89 = vrot.lane.b32.xlu0 %v27, 110
    %v90 = vpop.permute.xlu0 %89
    %91 = vrot.lane.b32.xlu0 %v31, 110
    %v92 = vpop.permute.xlu0 %91
    %93 = vrot.lane.b32.xlu0 %v28, 110
    %v94 = vpop.permute.xlu0 %93
    %95 = vrot.lane.b32.xlu0 %v32, 110
    %v96 = vpop.permute.xlu0 %95
    %vm97 = vcmp.lt.s32.totalorder %v44, 110
    %v98 = vsel %vm97, %v94, %v96
    %v99 = vsel %vm97, %v92, %v94
    %v100 = vsel %vm97, %v90, %v92
    %v101 = vsel %vm97, %v96, %v90
    %102 = vrot.lane.b32.xlu0 %v27, 96
    %v103 = vpop.permute.xlu0 %102
    %104 = vrot.lane.b32.xlu0 %v31, 96
    %v105 = vpop.permute.xlu0 %104
    %106 = vrot.lane.b32.xlu0 %v28, 96
    %v107 = vpop.permute.xlu0 %106
    %108 = vrot.lane.b32.xlu0 %v32, 96
    %v109 = vpop.permute.xlu0 %108
    %vm110 = vcmp.lt.s32.totalorder %v44, 96
    %v111 = vsel %vm110, %v107, %v109
    %v112 = vsel %vm110, %v105, %v107
    %v113 = vsel %vm110, %v103, %v105
    %v114 = vsel %vm110, %v109, %v103
    %115 = vrot.lane.b32.xlu0 %v27, 95
    %v116 = vpop.permute.xlu0 %115
    %117 = vrot.lane.b32.xlu0 %v31, 95
    %v118 = vpop.permute.xlu0 %117
    %119 = vrot.lane.b32.xlu0 %v28, 95
    %v120 = vpop.permute.xlu0 %119
    %121 = vrot.lane.b32.xlu0 %v32, 95
    %v122 = vpop.permute.xlu0 %121
    %vm123 = vcmp.lt.s32.totalorder %v44, 95
    %v124 = vsel %vm123, %v120, %v122
    %v125 = vsel %vm123, %v118, %v120
    %v126 = vsel %vm123, %v116, %v118
    %v127 = vsel %vm123, %v122, %v116
    %128 = vrot.lane.b32.xlu0 %v27, 94
    %v129 = vpop.permute.xlu0 %128
    %130 = vrot.lane.b32.xlu0 %v31, 94
    %v131 = vpop.permute.xlu0 %130
    %132 = vrot.lane.b32.xlu0 %v28, 94
    %v133 = vpop.permute.xlu0 %132
    %134 = vrot.lane.b32.xlu0 %v32, 94
    %v135 = vpop.permute.xlu0 %134
    %vm136 = vcmp.lt.s32.totalorder %v44, 94
    %v137 = vsel %vm136, %v133, %v135
    %v138 = vsel %vm136, %v131, %v133
    %v139 = vsel %vm136, %v129, %v131
    %v140 = vsel %vm136, %v135, %v129
    %v145 = vrot.slane %v48, 4
    %v146 = vrot.slane %v47, 4
    %v147 = vrot.slane %v46, 4
    %v148 = vrot.slane %v49, 4
    %v157 = vrot.slane %v74, 4
    %v158 = vrot.slane %v73, 4
    %v159 = vrot.slane %v72, 4
    %v160 = vrot.slane %v75, 4
    %v169 = vrot.slane %v100, 4
    %v170 = vrot.slane %v99, 4
    %v171 = vrot.slane %v98, 4
    %v172 = vrot.slane %v101, 4
    %v181 = vrot.slane %v126, 4
    %v182 = vrot.slane %v125, 4
    %v183 = vrot.slane %v124, 4
    %v184 = vrot.slane %v127, 4
    %vm189 = vcmask 1043456
    %v190 = vsel %vm189, %v27, %v145
    %v191 = vsel %vm189, %v31, %v146
    %v192 = vsel %vm189, %v28, %v147
    %v193 = vsel %vm189, %v32, %v148
    %v194 = vsel %vm189, %v61, %v157
    %v195 = vsel %vm189, %v60, %v158
    %v196 = vsel %vm189, %v59, %v159
    %v197 = vsel %vm189, %v62, %v160
    %v198 = vsel %vm189, %v87, %v169
    %v199 = vsel %vm189, %v86, %v170
    %v200 = vsel %vm189, %v85, %v171
    %v201 = vsel %vm189, %v88, %v172
    %v202 = vsel %vm189, %v113, %v181
    %v203 = vsel %vm189, %v112, %v182
    %v204 = vsel %vm189, %v111, %v183
    %v205 = vsel %vm189, %v114, %v184
    %v206 = vld [vmem:[%s1] sm:$0xff]
    %v207 = vld [vmem:[%s2] sm:$0xff]
    %209 = vset.pattern.permute.xlu0 0
    %210 = vperm.xlu0 %209, %v207
    %v211 = vpop.permute.xlu0 %210
    %vm213 = vcmask 293888
    %v215 = vsel %vm213, %v206, 0
    %v218 = vsel %vm189, %v139, 0
    %v221 = vsel %vm189, %v138, 0
    %v224 = vsel %vm189, %v137, 0
    %v227 = vsel %vm189, %v140, 0
    %v229 = vand.u32 %v191, 4294901760
    %230 = vmatprep.subr.mxu0 %v229
    %v231 = vand.u32 %v190, 4294901760
    %232 = vmatpush1.msra.mxu0 %v231
    %v233 = vand.u32 %v195, 4294901760
    %234 = vmatprep.subr.mxu0 %v233
    %v235 = vand.u32 %v194, 4294901760
    %236 = vmatpush1.msra.mxu0 %v235
    %v237 = vand.u32 %v199, 4294901760
    %238 = vmatprep.subr.mxu0 %v237
    %v239 = vand.u32 %v198, 4294901760
    %240 = vmatpush1.msra.mxu0 %v239
    %v241 = vand.u32 %v203, 4294901760
    %242 = vmatprep.subr.mxu0 %v241
    %v243 = vand.u32 %v202, 4294901760
    %244 = vmatpush1.msra.mxu0 %v243
    %v245 = vand.u32 %v221, 4294901760
    %246 = vmatprep.subr.mxu0 %v245
    %v247 = vand.u32 %v218, 4294901760
    %248 = vmatpush1.msra.mxu0 %v247
    %249 = vmatprep.subr.mxu0 0.0
    %250 = vmatpush1.msra.mxu0 0.0
    %251 = vmatprep.subr.mxu0 0.0
    %252 = vmatpush1.msra.mxu0 0.0
    %253 = vmatprep.subr.mxu0 0.0
    %254 = vmatpush1.msra.mxu0 0.0
    %255 = vmatprep.subr.mxu0 0.0
    %256 = vmatpush1.msra.mxu0 0.0
    %257 = vmatprep.subr.mxu0 0.0
    %258 = vmatpush1.msra.mxu0 0.0
    %259 = vmatprep.subr.mxu0 0.0
    %260 = vmatpush1.msra.mxu0 0.0
    %261 = vmatprep.subr.mxu0 0.0
    %262 = vmatpush1.msra.mxu0 0.0
    %263 = vmatprep.subr.mxu0 0.0
    %264 = vmatpush1.msra.mxu0 0.0
    %265 = vmatprep.subr.mxu0 0.0
    %266 = vmatpush1.msra.mxu0 0.0
    %267 = vmatprep.subr.mxu0 0.0
    %268 = vmatpush1.msra.mxu0 0.0
    %269 = vmatprep.subr.mxu0 0.0
    %270 = vmatpush1.msra.mxu0 0.0
    %271 = vmatprep.subr.mxu0 0.0
    %272 = vmatpush1.msra.mxu0 0.0
    %273 = vmatprep.subr.mxu0 0.0
    %274 = vmatpush1.msra.mxu0 0.0
    %275 = vmatprep.subr.mxu0 0.0
    %276 = vmatpush1.msra.mxu0 0.0
    %277 = vmatprep.subr.mxu0 0.0
    %278 = vmatpush1.msra.mxu0 0.0
    %279 = vmatprep.subr.mxu0 0.0
    %280 = vmatpush1.msra.mxu0 0.0
    %281 = vmatprep.subr.mxu0 0.0
    %282 = vmatpush1.msra.mxu0 0.0
    %283 = vmatprep.subr.mxu0 0.0
    %284 = vmatpush1.msra.mxu0 0.0
    %285 = vmatprep.subr.mxu0 0.0
    %286 = vmatpush1.msra.mxu0 0.0
    %287 = vmatprep.subr.mxu0 0.0
    %288 = vmatpush1.msra.mxu0 0.0
    %289 = vmatprep.subr.mxu0 0.0
    %290 = vmatpush1.msra.mxu0 0.0
    %291 = vmatprep.subr.mxu0 0.0
    %292 = vmatpush1.msra.mxu0 0.0
    %293 = vmatprep.subr.mxu0 0.0
    %294 = vmatpush1.msra.mxu0 0.0
    %295 = vmatprep.subr.mxu0 0.0
    %296 = vmatpush1.msra.mxu0 0.0
    %297 = vmatprep.subr.mxu0 0.0
    %298 = vmatpush1.msra.mxu0 0.0
    %299 = vmatprep.subr.mxu0 0.0
    %300 = vmatpush1.msra.mxu0 0.0
    %301 = vmatprep.subr.mxu0 0.0
    %302 = vmatpush1.msra.mxu0 0.0
    %303 = vmatprep.mubr.f32.mxu0 0.0
    %v304 = vand.u32 %v215, 4294901760
    %v305 = vsub.f32 %v215, %v304
    %v306 = vand.u32 %v305, 4294901760
    %v307 = vsub.f32 %v305, %v306
    %v308 = vand.u32 %v307, 4294901760
    %309 = vmatmul.mubr.f32.gmra.mrb[0].mxu0 %v308
    %v310 = vpop.f32.mrb[0].mxu0
    %v311 = vadd.f32 %v211, %v310
    %v312 = vpop.f32.mrb[0].mxu0
    %v313 = vadd.f32 %v211, %v312
    %314 = vdwg.mxu0
    %v315 = vand.u32 %v191, 4294901760
    %v316 = vsub.f32 %v191, %v315
    %v317 = vand.u32 %v316, 4294901760
    %v318 = vsub.f32 %v316, %v317
    %v319 = vand.u32 %v318, 4294901760
    %320 = vmatprep.subr.mxu0 %v319
    %v321 = vand.u32 %v190, 4294901760
    %v322 = vsub.f32 %v190, %v321
    %v323 = vand.u32 %v322, 4294901760
    %v324 = vsub.f32 %v322, %v323
    %v325 = vand.u32 %v324, 4294901760
    %326 = vmatpush1.msra.mxu0 %v325
    %v327 = vand.u32 %v195, 4294901760
    %v328 = vsub.f32 %v195, %v327
    %v329 = vand.u32 %v328, 4294901760
    %v330 = vsub.f32 %v328, %v329
    %v331 = vand.u32 %v330, 4294901760
    %332 = vmatprep.subr.mxu0 %v331
    %v333 = vand.u32 %v194, 4294901760
    %v334 = vsub.f32 %v194, %v333
    %v335 = vand.u32 %v334, 4294901760
    %v336 = vsub.f32 %v334, %v335
    %v337 = vand.u32 %v336, 4294901760
    %338 = vmatpush1.msra.mxu0 %v337
    %v339 = vand.u32 %v199, 4294901760
    %v340 = vsub.f32 %v199, %v339
    %v341 = vand.u32 %v340, 4294901760
    %v342 = vsub.f32 %v340, %v341
    %v343 = vand.u32 %v342, 4294901760
    %344 = vmatprep.subr.mxu0 %v343
    %v345 = vand.u32 %v198, 4294901760
    %v346 = vsub.f32 %v198, %v345
    %v347 = vand.u32 %v346, 4294901760
    %v348 = vsub.f32 %v346, %v347
    %v349 = vand.u32 %v348, 4294901760
    %350 = vmatpush1.msra.mxu0 %v349
    %v351 = vand.u32 %v203, 4294901760
    %v352 = vsub.f32 %v203, %v351
    %v353 = vand.u32 %v352, 4294901760
    %v354 = vsub.f32 %v352, %v353
    %v355 = vand.u32 %v354, 4294901760
    %356 = vmatprep.subr.mxu0 %v355
    %v357 = vand.u32 %v202, 4294901760
    %v358 = vsub.f32 %v202, %v357
    %v359 = vand.u32 %v358, 4294901760
    %v360 = vsub.f32 %v358, %v359
    %v361 = vand.u32 %v360, 4294901760
    %362 = vmatpush1.msra.mxu0 %v361
    %v363 = vand.u32 %v221, 4294901760
    %v364 = vsub.f32 %v221, %v363
    %v365 = vand.u32 %v364, 4294901760
    %v366 = vsub.f32 %v364, %v365
    %v367 = vand.u32 %v366, 4294901760
    %368 = vmatprep.subr.mxu0 %v367
    %v369 = vand.u32 %v218, 4294901760
    %v370 = vsub.f32 %v218, %v369
    %v371 = vand.u32 %v370, 4294901760
    %v372 = vsub.f32 %v370, %v371
    %v373 = vand.u32 %v372, 4294901760
    %374 = vmatpush1.msra.mxu0 %v373
    %375 = vmatprep.subr.mxu0 0.0
    %376 = vmatpush1.msra.mxu0 0.0
    %377 = vmatprep.subr.mxu0 0.0
    %378 = vmatpush1.msra.mxu0 0.0
    %379 = vmatprep.subr.mxu0 0.0
    %380 = vmatpush1.msra.mxu0 0.0
    %381 = vmatprep.subr.mxu0 0.0
    %382 = vmatpush1.msra.mxu0 0.0
    %383 = vmatprep.subr.mxu0 0.0
    %384 = vmatpush1.msra.mxu0 0.0
    %385 = vmatprep.subr.mxu0 0.0
    %386 = vmatpush1.msra.mxu0 0.0
    %387 = vmatprep.subr.mxu0 0.0
    %388 = vmatpush1.msra.mxu0 0.0
    %389 = vmatprep.subr.mxu0 0.0
    %390 = vmatpush1.msra.mxu0 0.0
    %391 = vmatprep.subr.mxu0 0.0
    %392 = vmatpush1.msra.mxu0 0.0
    %393 = vmatprep.subr.mxu0 0.0
    %394 = vmatpush1.msra.mxu0 0.0
    %395 = vmatprep.subr.mxu0 0.0
    %396 = vmatpush1.msra.mxu0 0.0
    %397 = vmatprep.subr.mxu0 0.0
    %398 = vmatpush1.msra.mxu0 0.0
    %399 = vmatprep.subr.mxu0 0.0
    %400 = vmatpush1.msra.mxu0 0.0
    %401 = vmatprep.subr.mxu0 0.0
    %402 = vmatpush1.msra.mxu0 0.0
    %403 = vmatprep.subr.mxu0 0.0
    %404 = vmatpush1.msra.mxu0 0.0
    %405 = vmatprep.subr.mxu0 0.0
    %406 = vmatpush1.msra.mxu0 0.0
    %407 = vmatprep.subr.mxu0 0.0
    %408 = vmatpush1.msra.mxu0 0.0
    %409 = vmatprep.subr.mxu0 0.0
    %410 = vmatpush1.msra.mxu0 0.0
    %411 = vmatprep.subr.mxu0 0.0
    %412 = vmatpush1.msra.mxu0 0.0
    %413 = vmatprep.subr.mxu0 0.0
    %414 = vmatpush1.msra.mxu0 0.0
    %415 = vmatprep.subr.mxu0 0.0
    %416 = vmatpush1.msra.mxu0 0.0
    %417 = vmatprep.subr.mxu0 0.0
    %418 = vmatpush1.msra.mxu0 0.0
    %419 = vmatprep.subr.mxu0 0.0
    %420 = vmatpush1.msra.mxu0 0.0
    %421 = vmatprep.subr.mxu0 0.0
    %422 = vmatpush1.msra.mxu0 0.0
    %423 = vmatprep.subr.mxu0 0.0
    %424 = vmatpush1.msra.mxu0 0.0
    %425 = vmatprep.subr.mxu0 0.0
    %426 = vmatpush1.msra.mxu0 0.0
    %427 = vmatprep.subr.mxu0 0.0
    %428 = vmatpush1.msra.mxu0 0.0
    %429 = vmatprep.mubr.f32.mxu0 0.0
    %v430 = vand.u32 %v215, 4294901760
    %431 = vmatmul.mubr.f32.gmra.mrb[0].mxu0 %v430
    %v432 = vpop.f32.mrb[0].mxu0
    %v433 = vadd.f32 %v311, %v432
    %v434 = vpop.f32.mrb[0].mxu0
    %v435 = vadd.f32 %v313, %v434
    %436 = vdwg.mxu0
    %v437 = vand.u32 %v191, 4294901760
    %v438 = vsub.f32 %v191, %v437
    %439 = vmatprep.subr.mxu0 %v438
    %v440 = vand.u32 %v190, 4294901760
    %v441 = vsub.f32 %v190, %v440
    %442 = vmatpush1.msra.mxu0 %v441
    %v443 = vand.u32 %v195, 4294901760
    %v444 = vsub.f32 %v195, %v443
    %445 = vmatprep.subr.mxu0 %v444
    %v446 = vand.u32 %v194, 4294901760
    %v447 = vsub.f32 %v194, %v446
    %448 = vmatpush1.msra.mxu0 %v447
    %v449 = vand.u32 %v199, 4294901760
    %v450 = vsub.f32 %v199, %v449
    %451 = vmatprep.subr.mxu0 %v450
    %v452 = vand.u32 %v198, 4294901760
    %v453 = vsub.f32 %v198, %v452
    %454 = vmatpush1.msra.mxu0 %v453
    %v455 = vand.u32 %v203, 4294901760
    %v456 = vsub.f32 %v203, %v455
    %457 = vmatprep.subr.mxu0 %v456
    %v458 = vand.u32 %v202, 4294901760
    %v459 = vsub.f32 %v202, %v458
    %460 = vmatpush1.msra.mxu0 %v459
    %v461 = vand.u32 %v221, 4294901760
    %v462 = vsub.f32 %v221, %v461
    %463 = vmatprep.subr.mxu0 %v462
    %v464 = vand.u32 %v218, 4294901760
    %v465 = vsub.f32 %v218, %v464
    %466 = vmatpush1.msra.mxu0 %v465
    %467 = vmatprep.subr.mxu0 0.0
    %468 = vmatpush1.msra.mxu0 0.0
    %469 = vmatprep.subr.mxu0 0.0
    %470 = vmatpush1.msra.mxu0 0.0
    %471 = vmatprep.subr.mxu0 0.0
    %472 = vmatpush1.msra.mxu0 0.0
    %473 = vmatprep.subr.mxu0 0.0
    %474 = vmatpush1.msra.mxu0 0.0
    %475 = vmatprep.subr.mxu0 0.0
    %476 = vmatpush1.msra.mxu0 0.0
    %477 = vmatprep.subr.mxu0 0.0
    %478 = vmatpush1.msra.mxu0 0.0
    %479 = vmatprep.subr.mxu0 0.0
    %480 = vmatpush1.msra.mxu0 0.0
    %481 = vmatprep.subr.mxu0 0.0
    %482 = vmatpush1.msra.mxu0 0.0
    %483 = vmatprep.subr.mxu0 0.0
    %484 = vmatpush1.msra.mxu0 0.0
    %485 = vmatprep.subr.mxu0 0.0
    %486 = vmatpush1.msra.mxu0 0.0
    %487 = vmatprep.subr.mxu0 0.0
    %488 = vmatpush1.msra.mxu0 0.0
    %489 = vmatprep.subr.mxu0 0.0
    %490 = vmatpush1.msra.mxu0 0.0
    %491 = vmatprep.subr.mxu0 0.0
    %492 = vmatpush1.msra.mxu0 0.0
    %493 = vmatprep.subr.mxu0 0.0
    %494 = vmatpush1.msra.mxu0 0.0
    %495 = vmatprep.subr.mxu0 0.0
    %496 = vmatpush1.msra.mxu0 0.0
    %497 = vmatprep.subr.mxu0 0.0
    %498 = vmatpush1.msra.mxu0 0.0
    %499 = vmatprep.subr.mxu0 0.0
    %500 = vmatpush1.msra.mxu0 0.0
    %501 = vmatprep.subr.mxu0 0.0
    %502 = vmatpush1.msra.mxu0 0.0
    %503 = vmatprep.subr.mxu0 0.0
    %504 = vmatpush1.msra.mxu0 0.0
    %505 = vmatprep.subr.mxu0 0.0
    %506 = vmatpush1.msra.mxu0 0.0
    %507 = vmatprep.subr.mxu0 0.0
    %508 = vmatpush1.msra.mxu0 0.0
    %509 = vmatprep.subr.mxu0 0.0
    %510 = vmatpush1.msra.mxu0 0.0
    %511 = vmatprep.subr.mxu0 0.0
    %512 = vmatpush1.msra.mxu0 0.0
    %513 = vmatprep.subr.mxu0 0.0
    %514 = vmatpush1.msra.mxu0 0.0
    %515 = vmatprep.subr.mxu0 0.0
    %516 = vmatpush1.msra.mxu0 0.0
    %517 = vmatprep.subr.mxu0 0.0
    %518 = vmatpush1.msra.mxu0 0.0
    %519 = vmatprep.subr.mxu0 0.0
    %520 = vmatpush1.msra.mxu0 0.0
    %521 = vmatprep.mubr.f32.mxu0 0.0
    %v522 = vand.u32 %v215, 4294901760
    %v523 = vsub.f32 %v215, %v522
    %524 = vmatmul.mubr.f32.gmra.mrb[0].mxu0 %v523
    %v525 = vpop.f32.mrb[0].mxu0
    %v526 = vadd.f32 %v433, %v525
    %v527 = vpop.f32.mrb[0].mxu0
    %v528 = vadd.f32 %v435, %v527
    %529 = vdwg.mxu0
    %v530 = vand.u32 %v191, 4294901760
    %531 = vmatprep.subr.mxu0 %v530
    %v532 = vand.u32 %v190, 4294901760
    %533 = vmatpush1.msra.mxu0 %v532
    %v534 = vand.u32 %v195, 4294901760
    %535 = vmatprep.subr.mxu0 %v534
    %v536 = vand.u32 %v194, 4294901760
    %537 = vmatpush1.msra.mxu0 %v536
    %v538 = vand.u32 %v199, 4294901760
    %539 = vmatprep.subr.mxu0 %v538
    %v540 = vand.u32 %v198, 4294901760
    %541 = vmatpush1.msra.mxu0 %v540
    %v542 = vand.u32 %v203, 4294901760
    %543 = vmatprep.subr.mxu0 %v542
    %v544 = vand.u32 %v202, 4294901760
    %545 = vmatpush1.msra.mxu0 %v544
    %v546 = vand.u32 %v221, 4294901760
    %547 = vmatprep.subr.mxu0 %v546
    %v548 = vand.u32 %v218, 4294901760
    %549 = vmatpush1.msra.mxu0 %v548
    %550 = vmatprep.subr.mxu0 0.0
    %551 = vmatpush1.msra.mxu0 0.0
    %552 = vmatprep.subr.mxu0 0.0
    %553 = vmatpush1.msra.mxu0 0.0
    %554 = vmatprep.subr.mxu0 0.0
    %555 = vmatpush1.msra.mxu0 0.0
    %556 = vmatprep.subr.mxu0 0.0
    %557 = vmatpush1.msra.mxu0 0.0
    %558 = vmatprep.subr.mxu0 0.0
    %559 = vmatpush1.msra.mxu0 0.0
    %560 = vmatprep.subr.mxu0 0.0
    %561 = vmatpush1.msra.mxu0 0.0
    %562 = vmatprep.subr.mxu0 0.0
    %563 = vmatpush1.msra.mxu0 0.0
    %564 = vmatprep.subr.mxu0 0.0
    %565 = vmatpush1.msra.mxu0 0.0
    %566 = vmatprep.subr.mxu0 0.0
    %567 = vmatpush1.msra.mxu0 0.0
    %568 = vmatprep.subr.mxu0 0.0
    %569 = vmatpush1.msra.mxu0 0.0
    %570 = vmatprep.subr.mxu0 0.0
    %571 = vmatpush1.msra.mxu0 0.0
    %572 = vmatprep.subr.mxu0 0.0
    %573 = vmatpush1.msra.mxu0 0.0
    %574 = vmatprep.subr.mxu0 0.0
    %575 = vmatpush1.msra.mxu0 0.0
    %576 = vmatprep.subr.mxu0 0.0
    %577 = vmatpush1.msra.mxu0 0.0
    %578 = vmatprep.subr.mxu0 0.0
    %579 = vmatpush1.msra.mxu0 0.0
    %580 = vmatprep.subr.mxu0 0.0
    %581 = vmatpush1.msra.mxu0 0.0
    %582 = vmatprep.subr.mxu0 0.0
    %583 = vmatpush1.msra.mxu0 0.0
    %584 = vmatprep.subr.mxu0 0.0
    %585 = vmatpush1.msra.mxu0 0.0
    %586 = vmatprep.subr.mxu0 0.0
    %587 = vmatpush1.msra.mxu0 0.0
    %588 = vmatprep.subr.mxu0 0.0
    %589 = vmatpush1.msra.mxu0 0.0
    %590 = vmatprep.subr.mxu0 0.0
    %591 = vmatpush1.msra.mxu0 0.0
    %592 = vmatprep.subr.mxu0 0.0
    %593 = vmatpush1.msra.mxu0 0.0
    %594 = vmatprep.subr.mxu0 0.0
    %595 = vmatpush1.msra.mxu0 0.0
    %596 = vmatprep.subr.mxu0 0.0
    %597 = vmatpush1.msra.mxu0 0.0
    %598 = vmatprep.subr.mxu0 0.0
    %599 = vmatpush1.msra.mxu0 0.0
    %600 = vmatprep.subr.mxu0 0.0
    %601 = vmatpush1.msra.mxu0 0.0
    %602 = vmatprep.subr.mxu0 0.0
    %603 = vmatpush1.msra.mxu0 0.0
    %604 = vmatprep.mubr.f32.mxu0 0.0
    %v605 = vand.u32 %v215, 4294901760
    %v606 = vsub.f32 %v215, %v605
    %v607 = vand.u32 %v606, 4294901760
    %608 = vmatmul.mubr.f32.gmra.mrb[0].mxu0 %v607
    %v609 = vpop.f32.mrb[0].mxu0
    %v610 = vadd.f32 %v526, %v609
    %v611 = vpop.f32.mrb[0].mxu0
    %v612 = vadd.f32 %v528, %v611
    %613 = vdwg.mxu0
    %v614 = vand.u32 %v191, 4294901760
    %v615 = vsub.f32 %v191, %v614
    %v616 = vand.u32 %v615, 4294901760
    %617 = vmatprep.subr.mxu0 %v616
    %v618 = vand.u32 %v190, 4294901760
    %v619 = vsub.f32 %v190, %v618
    %v620 = vand.u32 %v619, 4294901760
    %621 = vmatpush1.msra.mxu0 %v620
    %v622 = vand.u32 %v195, 4294901760
    %v623 = vsub.f32 %v195, %v622
    %v624 = vand.u32 %v623, 4294901760
    %625 = vmatprep.subr.mxu0 %v624
    %v626 = vand.u32 %v194, 4294901760
    %v627 = vsub.f32 %v194, %v626
    %v628 = vand.u32 %v627, 4294901760
    %629 = vmatpush1.msra.mxu0 %v628
    %v630 = vand.u32 %v199, 4294901760
    %v631 = vsub.f32 %v199, %v630
    %v632 = vand.u32 %v631, 4294901760
    %633 = vmatprep.subr.mxu0 %v632
    %v634 = vand.u32 %v198, 4294901760
    %v635 = vsub.f32 %v198, %v634
    %v636 = vand.u32 %v635, 4294901760
    %637 = vmatpush1.msra.mxu0 %v636
    %v638 = vand.u32 %v203, 4294901760
    %v639 = vsub.f32 %v203, %v638
    %v640 = vand.u32 %v639, 4294901760
    %641 = vmatprep.subr.mxu0 %v640
    %v642 = vand.u32 %v202, 4294901760
    %v643 = vsub.f32 %v202, %v642
    %v644 = vand.u32 %v643, 4294901760
    %645 = vmatpush1.msra.mxu0 %v644
    %v646 = vand.u32 %v221, 4294901760
    %v647 = vsub.f32 %v221, %v646
    %v648 = vand.u32 %v647, 4294901760
    %649 = vmatprep.subr.mxu0 %v648
    %v650 = vand.u32 %v218, 4294901760
    %v651 = vsub.f32 %v218, %v650
    %v652 = vand.u32 %v651, 4294901760
    %653 = vmatpush1.msra.mxu0 %v652
    %654 = vmatprep.subr.mxu0 0.0
    %655 = vmatpush1.msra.mxu0 0.0
    %656 = vmatprep.subr.mxu0 0.0
    %657 = vmatpush1.msra.mxu0 0.0
    %658 = vmatprep.subr.mxu0 0.0
    %659 = vmatpush1.msra.mxu0 0.0
    %660 = vmatprep.subr.mxu0 0.0
    %661 = vmatpush1.msra.mxu0 0.0
    %662 = vmatprep.subr.mxu0 0.0
    %663 = vmatpush1.msra.mxu0 0.0
    %664 = vmatprep.subr.mxu0 0.0
    %665 = vmatpush1.msra.mxu0 0.0
    %666 = vmatprep.subr.mxu0 0.0
    %667 = vmatpush1.msra.mxu0 0.0
    %668 = vmatprep.subr.mxu0 0.0
    %669 = vmatpush1.msra.mxu0 0.0
    %670 = vmatprep.subr.mxu0 0.0
    %671 = vmatpush1.msra.mxu0 0.0
    %672 = vmatprep.subr.mxu0 0.0
    %673 = vmatpush1.msra.mxu0 0.0
    %674 = vmatprep.subr.mxu0 0.0
    %675 = vmatpush1.msra.mxu0 0.0
    %676 = vmatprep.subr.mxu0 0.0
    %677 = vmatpush1.msra.mxu0 0.0
    %678 = vmatprep.subr.mxu0 0.0
    %679 = vmatpush1.msra.mxu0 0.0
    %680 = vmatprep.subr.mxu0 0.0
    %681 = vmatpush1.msra.mxu0 0.0
    %682 = vmatprep.subr.mxu0 0.0
    %683 = vmatpush1.msra.mxu0 0.0
    %684 = vmatprep.subr.mxu0 0.0
    %685 = vmatpush1.msra.mxu0 0.0
    %686 = vmatprep.subr.mxu0 0.0
    %687 = vmatpush1.msra.mxu0 0.0
    %688 = vmatprep.subr.mxu0 0.0
    %689 = vmatpush1.msra.mxu0 0.0
    %690 = vmatprep.subr.mxu0 0.0
    %691 = vmatpush1.msra.mxu0 0.0
    %692 = vmatprep.subr.mxu0 0.0
    %693 = vmatpush1.msra.mxu0 0.0
    %694 = vmatprep.subr.mxu0 0.0
    %695 = vmatpush1.msra.mxu0 0.0
    %696 = vmatprep.subr.mxu0 0.0
    %697 = vmatpush1.msra.mxu0 0.0
    %698 = vmatprep.subr.mxu0 0.0
    %699 = vmatpush1.msra.mxu0 0.0
    %700 = vmatprep.subr.mxu0 0.0
    %701 = vmatpush1.msra.mxu0 0.0
    %702 = vmatprep.subr.mxu0 0.0
    %703 = vmatpush1.msra.mxu0 0.0
    %704 = vmatprep.subr.mxu0 0.0
    %705 = vmatpush1.msra.mxu0 0.0
    %706 = vmatprep.subr.mxu0 0.0
    %707 = vmatpush1.msra.mxu0 0.0
    %708 = vmatprep.mubr.f32.mxu0 0.0
    %v709 = vand.u32 %v215, 4294901760
    %710 = vmatmul.mubr.f32.gmra.mrb[0].mxu0 %v709
    %v711 = vpop.f32.mrb[0].mxu0
    %v712 = vadd.f32 %v610, %v711
    %v713 = vpop.f32.mrb[0].mxu0
    %v714 = vadd.f32 %v612, %v713
    %715 = vdwg.mxu0
    %v716 = vand.u32 %v191, 4294901760
    %717 = vmatprep.subr.mxu0 %v716
    %v718 = vand.u32 %v190, 4294901760
    %719 = vmatpush1.msra.mxu0 %v718
    %v720 = vand.u32 %v195, 4294901760
    %721 = vmatprep.subr.mxu0 %v720
    %v722 = vand.u32 %v194, 4294901760
    %723 = vmatpush1.msra.mxu0 %v722
    %v724 = vand.u32 %v199, 4294901760
    %725 = vmatprep.subr.mxu0 %v724
    %v726 = vand.u32 %v198, 4294901760
    %727 = vmatpush1.msra.mxu0 %v726
    %v728 = vand.u32 %v203, 4294901760
    %729 = vmatprep.subr.mxu0 %v728
    %v730 = vand.u32 %v202, 4294901760
    %731 = vmatpush1.msra.mxu0 %v730
    %v732 = vand.u32 %v221, 4294901760
    %733 = vmatprep.subr.mxu0 %v732
    %v734 = vand.u32 %v218, 4294901760
    %735 = vmatpush1.msra.mxu0 %v734
    %736 = vmatprep.subr.mxu0 0.0
    %737 = vmatpush1.msra.mxu0 0.0
    %738 = vmatprep.subr.mxu0 0.0
    %739 = vmatpush1.msra.mxu0 0.0
    %740 = vmatprep.subr.mxu0 0.0
    %741 = vmatpush1.msra.mxu0 0.0
    %742 = vmatprep.subr.mxu0 0.0
    %743 = vmatpush1.msra.mxu0 0.0
    %744 = vmatprep.subr.mxu0 0.0
    %745 = vmatpush1.msra.mxu0 0.0
    %746 = vmatprep.subr.mxu0 0.0
    %747 = vmatpush1.msra.mxu0 0.0
    %748 = vmatprep.subr.mxu0 0.0
    %749 = vmatpush1.msra.mxu0 0.0
    %750 = vmatprep.subr.mxu0 0.0
    %751 = vmatpush1.msra.mxu0 0.0
    %752 = vmatprep.subr.mxu0 0.0
    %753 = vmatpush1.msra.mxu0 0.0
    %754 = vmatprep.subr.mxu0 0.0
    %755 = vmatpush1.msra.mxu0 0.0
    %756 = vmatprep.subr.mxu0 0.0
    %757 = vmatpush1.msra.mxu0 0.0
    %758 = vmatprep.subr.mxu0 0.0
    %759 = vmatpush1.msra.mxu0 0.0
    %760 = vmatprep.subr.mxu0 0.0
    %761 = vmatpush1.msra.mxu0 0.0
    %762 = vmatprep.subr.mxu0 0.0
    %763 = vmatpush1.msra.mxu0 0.0
    %764 = vmatprep.subr.mxu0 0.0
    %765 = vmatpush1.msra.mxu0 0.0
    %766 = vmatprep.subr.mxu0 0.0
    %767 = vmatpush1.msra.mxu0 0.0
    %768 = vmatprep.subr.mxu0 0.0
    %769 = vmatpush1.msra.mxu0 0.0
    %770 = vmatprep.subr.mxu0 0.0
    %771 = vmatpush1.msra.mxu0 0.0
    %772 = vmatprep.subr.mxu0 0.0
    %773 = vmatpush1.msra.mxu0 0.0
    %774 = vmatprep.subr.mxu0 0.0
    %775 = vmatpush1.msra.mxu0 0.0
    %776 = vmatprep.subr.mxu0 0.0
    %777 = vmatpush1.msra.mxu0 0.0
    %778 = vmatprep.subr.mxu0 0.0
    %779 = vmatpush1.msra.mxu0 0.0
    %780 = vmatprep.subr.mxu0 0.0
    %781 = vmatpush1.msra.mxu0 0.0
    %782 = vmatprep.subr.mxu0 0.0
    %783 = vmatpush1.msra.mxu0 0.0
    %784 = vmatprep.subr.mxu0 0.0
    %785 = vmatpush1.msra.mxu0 0.0
    %786 = vmatprep.subr.mxu0 0.0
    %787 = vmatpush1.msra.mxu0 0.0
    %788 = vmatprep.subr.mxu0 0.0
    %789 = vmatpush1.msra.mxu0 0.0
    %790 = vmatprep.mubr.f32.mxu0 0.0
    %v791 = vand.u32 %v215, 4294901760
    %792 = vmatmul.mubr.f32.gmra.mrb[0].mxu0 %v791
    %v793 = vpop.f32.mrb[0].mxu0
    %v794 = vadd.f32 %v712, %v793
    %v795 = vpop.f32.mrb[0].mxu0
    %v796 = vadd.f32 %v714, %v795
    %797 = vdwg.mxu0
    %v798 = vand.u32 %v193, 4294901760
    %799 = vmatprep.subr.mxu0 %v798
    %v800 = vand.u32 %v192, 4294901760
    %801 = vmatpush1.msra.mxu0 %v800
    %v802 = vand.u32 %v197, 4294901760
    %803 = vmatprep.subr.mxu0 %v802
    %v804 = vand.u32 %v196, 4294901760
    %805 = vmatpush1.msra.mxu0 %v804
    %v806 = vand.u32 %v201, 4294901760
    %807 = vmatprep.subr.mxu0 %v806
    %v808 = vand.u32 %v200, 4294901760
    %809 = vmatpush1.msra.mxu0 %v808
    %v810 = vand.u32 %v205, 4294901760
    %811 = vmatprep.subr.mxu0 %v810
    %v812 = vand.u32 %v204, 4294901760
    %813 = vmatpush1.msra.mxu0 %v812
    %v814 = vand.u32 %v227, 4294901760
    %815 = vmatprep.subr.mxu0 %v814
    %v816 = vand.u32 %v224, 4294901760
    %817 = vmatpush1.msra.mxu0 %v816
    %818 = vmatprep.subr.mxu0 0.0
    %819 = vmatpush1.msra.mxu0 0.0
    %820 = vmatprep.subr.mxu0 0.0
    %821 = vmatpush1.msra.mxu0 0.0
    %822 = vmatprep.subr.mxu0 0.0
    %823 = vmatpush1.msra.mxu0 0.0
    %824 = vmatprep.subr.mxu0 0.0
    %825 = vmatpush1.msra.mxu0 0.0
    %826 = vmatprep.subr.mxu0 0.0
    %827 = vmatpush1.msra.mxu0 0.0
    %828 = vmatprep.subr.mxu0 0.0
    %829 = vmatpush1.msra.mxu0 0.0
    %830 = vmatprep.subr.mxu0 0.0
    %831 = vmatpush1.msra.mxu0 0.0
    %832 = vmatprep.subr.mxu0 0.0
    %833 = vmatpush1.msra.mxu0 0.0
    %834 = vmatprep.subr.mxu0 0.0
    %835 = vmatpush1.msra.mxu0 0.0
    %836 = vmatprep.subr.mxu0 0.0
    %837 = vmatpush1.msra.mxu0 0.0
    %838 = vmatprep.subr.mxu0 0.0
    %839 = vmatpush1.msra.mxu0 0.0
    %840 = vmatprep.subr.mxu0 0.0
    %841 = vmatpush1.msra.mxu0 0.0
    %842 = vmatprep.subr.mxu0 0.0
    %843 = vmatpush1.msra.mxu0 0.0
    %844 = vmatprep.subr.mxu0 0.0
    %845 = vmatpush1.msra.mxu0 0.0
    %846 = vmatprep.subr.mxu0 0.0
    %847 = vmatpush1.msra.mxu0 0.0
    %848 = vmatprep.subr.mxu0 0.0
    %849 = vmatpush1.msra.mxu0 0.0
    %850 = vmatprep.subr.mxu0 0.0
    %851 = vmatpush1.msra.mxu0 0.0
    %852 = vmatprep.subr.mxu0 0.0
    %853 = vmatpush1.msra.mxu0 0.0
    %854 = vmatprep.subr.mxu0 0.0
    %855 = vmatpush1.msra.mxu0 0.0
    %856 = vmatprep.subr.mxu0 0.0
    %857 = vmatpush1.msra.mxu0 0.0
    %858 = vmatprep.subr.mxu0 0.0
    %859 = vmatpush1.msra.mxu0 0.0
    %860 = vmatprep.subr.mxu0 0.0
    %861 = vmatpush1.msra.mxu0 0.0
    %862 = vmatprep.subr.mxu0 0.0
    %863 = vmatpush1.msra.mxu0 0.0
    %864 = vmatprep.subr.mxu0 0.0
    %865 = vmatpush1.msra.mxu0 0.0
    %866 = vmatprep.subr.mxu0 0.0
    %867 = vmatpush1.msra.mxu0 0.0
    %868 = vmatprep.subr.mxu0 0.0
    %869 = vmatpush1.msra.mxu0 0.0
    %870 = vmatprep.subr.mxu0 0.0
    %871 = vmatpush1.msra.mxu0 0.0
    %872 = vmatprep.mubr.f32.mxu0 0.0
    %v873 = vand.u32 %v215, 4294901760
    %v874 = vsub.f32 %v215, %v873
    %v875 = vand.u32 %v874, 4294901760
    %v876 = vsub.f32 %v874, %v875
    %v877 = vand.u32 %v876, 4294901760
    %878 = vmatmul.mubr.f32.gmra.mrb[0].mxu0 %v877
    %v879 = vpop.f32.mrb[0].mxu0
    %v880 = vadd.f32 %v211, %v879
    %v881 = vpop.f32.mrb[0].mxu0
    %v882 = vadd.f32 %v211, %v881
    %883 = vdwg.mxu0
    %v884 = vand.u32 %v193, 4294901760
    %v885 = vsub.f32 %v193, %v884
    %v886 = vand.u32 %v885, 4294901760
    %v887 = vsub.f32 %v885, %v886
    %v888 = vand.u32 %v887, 4294901760
    %889 = vmatprep.subr.mxu0 %v888
    %v890 = vand.u32 %v192, 4294901760
    %v891 = vsub.f32 %v192, %v890
    %v892 = vand.u32 %v891, 4294901760
    %v893 = vsub.f32 %v891, %v892
    %v894 = vand.u32 %v893, 4294901760
    %895 = vmatpush1.msra.mxu0 %v894
    %v896 = vand.u32 %v197, 4294901760
    %v897 = vsub.f32 %v197, %v896
    %v898 = vand.u32 %v897, 4294901760
    %v899 = vsub.f32 %v897, %v898
    %v900 = vand.u32 %v899, 4294901760
    %901 = vmatprep.subr.mxu0 %v900
    %v902 = vand.u32 %v196, 4294901760
    %v903 = vsub.f32 %v196, %v902
    %v904 = vand.u32 %v903, 4294901760
    %v905 = vsub.f32 %v903, %v904
    %v906 = vand.u32 %v905, 4294901760
    %907 = vmatpush1.msra.mxu0 %v906
    %v908 = vand.u32 %v201, 4294901760
    %v909 = vsub.f32 %v201, %v908
    %v910 = vand.u32 %v909, 4294901760
    %v911 = vsub.f32 %v909, %v910
    %v912 = vand.u32 %v911, 4294901760
    %913 = vmatprep.subr.mxu0 %v912
    %v914 = vand.u32 %v200, 4294901760
    %v915 = vsub.f32 %v200, %v914
    %v916 = vand.u32 %v915, 4294901760
    %v917 = vsub.f32 %v915, %v916
    %v918 = vand.u32 %v917, 4294901760
    %919 = vmatpush1.msra.mxu0 %v918
    %v920 = vand.u32 %v205, 4294901760
    %v921 = vsub.f32 %v205, %v920
    %v922 = vand.u32 %v921, 4294901760
    %v923 = vsub.f32 %v921, %v922
    %v924 = vand.u32 %v923, 4294901760
    %925 = vmatprep.subr.mxu0 %v924
    %v926 = vand.u32 %v204, 4294901760
    %v927 = vsub.f32 %v204, %v926
    %v928 = vand.u32 %v927, 4294901760
    %v929 = vsub.f32 %v927, %v928
    %v930 = vand.u32 %v929, 4294901760
    %931 = vmatpush1.msra.mxu0 %v930
    %v932 = vand.u32 %v227, 4294901760
    %v933 = vsub.f32 %v227, %v932
    %v934 = vand.u32 %v933, 4294901760
    %v935 = vsub.f32 %v933, %v934
    %v936 = vand.u32 %v935, 4294901760
    %937 = vmatprep.subr.mxu0 %v936
    %v938 = vand.u32 %v224, 4294901760
    %v939 = vsub.f32 %v224, %v938
    %v940 = vand.u32 %v939, 4294901760
    %v941 = vsub.f32 %v939, %v940
    %v942 = vand.u32 %v941, 4294901760
    %943 = vmatpush1.msra.mxu0 %v942
    %944 = vmatprep.subr.mxu0 0.0
    %945 = vmatpush1.msra.mxu0 0.0
    %946 = vmatprep.subr.mxu0 0.0
    %947 = vmatpush1.msra.mxu0 0.0
    %948 = vmatprep.subr.mxu0 0.0
    %949 = vmatpush1.msra.mxu0 0.0
    %950 = vmatprep.subr.mxu0 0.0
    %951 = vmatpush1.msra.mxu0 0.0
    %952 = vmatprep.subr.mxu0 0.0
    %953 = vmatpush1.msra.mxu0 0.0
    %954 = vmatprep.subr.mxu0 0.0
    %955 = vmatpush1.msra.mxu0 0.0
    %956 = vmatprep.subr.mxu0 0.0
    %957 = vmatpush1.msra.mxu0 0.0
    %958 = vmatprep.subr.mxu0 0.0
    %959 = vmatpush1.msra.mxu0 0.0
    %960 = vmatprep.subr.mxu0 0.0
    %961 = vmatpush1.msra.mxu0 0.0
    %962 = vmatprep.subr.mxu0 0.0
    %963 = vmatpush1.msra.mxu0 0.0
    %964 = vmatprep.subr.mxu0 0.0
    %965 = vmatpush1.msra.mxu0 0.0
    %966 = vmatprep.subr.mxu0 0.0
    %967 = vmatpush1.msra.mxu0 0.0
    %968 = vmatprep.subr.mxu0 0.0
    %969 = vmatpush1.msra.mxu0 0.0
    %970 = vmatprep.subr.mxu0 0.0
    %971 = vmatpush1.msra.mxu0 0.0
    %972 = vmatprep.subr.mxu0 0.0
    %973 = vmatpush1.msra.mxu0 0.0
    %974 = vmatprep.subr.mxu0 0.0
    %975 = vmatpush1.msra.mxu0 0.0
    %976 = vmatprep.subr.mxu0 0.0
    %977 = vmatpush1.msra.mxu0 0.0
    %978 = vmatprep.subr.mxu0 0.0
    %979 = vmatpush1.msra.mxu0 0.0
    %980 = vmatprep.subr.mxu0 0.0
    %981 = vmatpush1.msra.mxu0 0.0
    %982 = vmatprep.subr.mxu0 0.0
    %983 = vmatpush1.msra.mxu0 0.0
    %984 = vmatprep.subr.mxu0 0.0
    %985 = vmatpush1.msra.mxu0 0.0
    %986 = vmatprep.subr.mxu0 0.0
    %987 = vmatpush1.msra.mxu0 0.0
    %988 = vmatprep.subr.mxu0 0.0
    %989 = vmatpush1.msra.mxu0 0.0
    %990 = vmatprep.subr.mxu0 0.0
    %991 = vmatpush1.msra.mxu0 0.0
    %992 = vmatprep.subr.mxu0 0.0
    %993 = vmatpush1.msra.mxu0 0.0
    %994 = vmatprep.subr.mxu0 0.0
    %995 = vmatpush1.msra.mxu0 0.0
    %996 = vmatprep.subr.mxu0 0.0
    %997 = vmatpush1.msra.mxu0 0.0
    %998 = vmatprep.mubr.f32.mxu0 0.0
    %v999 = vand.u32 %v215, 4294901760
    %1000 = vmatmul.mubr.f32.gmra.mrb[0].mxu0 %v999
    %v1001 = vpop.f32.mrb[0].mxu0
    %v1002 = vadd.f32 %v880, %v1001
    %v1003 = vpop.f32.mrb[0].mxu0
    %v1004 = vadd.f32 %v882, %v1003
    %1005 = vdwg.mxu0
    %v1006 = vand.u32 %v193, 4294901760
    %v1007 = vsub.f32 %v193, %v1006
    %1008 = vmatprep.subr.mxu0 %v1007
    %v1009 = vand.u32 %v192, 4294901760
    %v1010 = vsub.f32 %v192, %v1009
    %1011 = vmatpush1.msra.mxu0 %v1010
    %v1012 = vand.u32 %v197, 4294901760
    %v1013 = vsub.f32 %v197, %v1012
    %1014 = vmatprep.subr.mxu0 %v1013
    %v1015 = vand.u32 %v196, 4294901760
    %v1016 = vsub.f32 %v196, %v1015
    %1017 = vmatpush1.msra.mxu0 %v1016
    %v1018 = vand.u32 %v201, 4294901760
    %v1019 = vsub.f32 %v201, %v1018
    %1020 = vmatprep.subr.mxu0 %v1019
    %v1021 = vand.u32 %v200, 4294901760
    %v1022 = vsub.f32 %v200, %v1021
    %1023 = vmatpush1.msra.mxu0 %v1022
    %v1024 = vand.u32 %v205, 4294901760
    %v1025 = vsub.f32 %v205, %v1024
    %1026 = vmatprep.subr.mxu0 %v1025
    %v1027 = vand.u32 %v204, 4294901760
    %v1028 = vsub.f32 %v204, %v1027
    %1029 = vmatpush1.msra.mxu0 %v1028
    %v1030 = vand.u32 %v227, 4294901760
    %v1031 = vsub.f32 %v227, %v1030
    %1032 = vmatprep.subr.mxu0 %v1031
    %v1033 = vand.u32 %v224, 4294901760
    %v1034 = vsub.f32 %v224, %v1033
    %1035 = vmatpush1.msra.mxu0 %v1034
    %1036 = vmatprep.subr.mxu0 0.0
    %1037 = vmatpush1.msra.mxu0 0.0
    %1038 = vmatprep.subr.mxu0 0.0
    %1039 = vmatpush1.msra.mxu0 0.0
    %1040 = vmatprep.subr.mxu0 0.0
    %1041 = vmatpush1.msra.mxu0 0.0
    %1042 = vmatprep.subr.mxu0 0.0
    %1043 = vmatpush1.msra.mxu0 0.0
    %1044 = vmatprep.subr.mxu0 0.0
    %1045 = vmatpush1.msra.mxu0 0.0
    %1046 = vmatprep.subr.mxu0 0.0
    %1047 = vmatpush1.msra.mxu0 0.0
    %1048 = vmatprep.subr.mxu0 0.0
    %1049 = vmatpush1.msra.mxu0 0.0
    %1050 = vmatprep.subr.mxu0 0.0
    %1051 = vmatpush1.msra.mxu0 0.0
    %1052 = vmatprep.subr.mxu0 0.0
    %1053 = vmatpush1.msra.mxu0 0.0
    %1054 = vmatprep.subr.mxu0 0.0
    %1055 = vmatpush1.msra.mxu0 0.0
    %1056 = vmatprep.subr.mxu0 0.0
    %1057 = vmatpush1.msra.mxu0 0.0
    %1058 = vmatprep.subr.mxu0 0.0
    %1059 = vmatpush1.msra.mxu0 0.0
    %1060 = vmatprep.subr.mxu0 0.0
    %1061 = vmatpush1.msra.mxu0 0.0
    %1062 = vmatprep.subr.mxu0 0.0
    %1063 = vmatpush1.msra.mxu0 0.0
    %1064 = vmatprep.subr.mxu0 0.0
    %1065 = vmatpush1.msra.mxu0 0.0
    %1066 = vmatprep.subr.mxu0 0.0
    %1067 = vmatpush1.msra.mxu0 0.0
    %1068 = vmatprep.subr.mxu0 0.0
    %1069 = vmatpush1.msra.mxu0 0.0
    %1070 = vmatprep.subr.mxu0 0.0
    %1071 = vmatpush1.msra.mxu0 0.0
    %1072 = vmatprep.subr.mxu0 0.0
    %1073 = vmatpush1.msra.mxu0 0.0
    %1074 = vmatprep.subr.mxu0 0.0
    %1075 = vmatpush1.msra.mxu0 0.0
    %1076 = vmatprep.subr.mxu0 0.0
    %1077 = vmatpush1.msra.mxu0 0.0
    %1078 = vmatprep.subr.mxu0 0.0
    %1079 = vmatpush1.msra.mxu0 0.0
    %1080 = vmatprep.subr.mxu0 0.0
    %1081 = vmatpush1.msra.mxu0 0.0
    %1082 = vmatprep.subr.mxu0 0.0
    %1083 = vmatpush1.msra.mxu0 0.0
    %1084 = vmatprep.subr.mxu0 0.0
    %1085 = vmatpush1.msra.mxu0 0.0
    %1086 = vmatprep.subr.mxu0 0.0
    %1087 = vmatpush1.msra.mxu0 0.0
    %1088 = vmatprep.subr.mxu0 0.0
    %1089 = vmatpush1.msra.mxu0 0.0
    %1090 = vmatprep.mubr.f32.mxu0 0.0
    %v1091 = vand.u32 %v215, 4294901760
    %v1092 = vsub.f32 %v215, %v1091
    %1093 = vmatmul.mubr.f32.gmra.mrb[0].mxu0 %v1092
    %v1094 = vpop.f32.mrb[0].mxu0
    %v1095 = vadd.f32 %v1002, %v1094
    %v1096 = vpop.f32.mrb[0].mxu0
    %v1097 = vadd.f32 %v1004, %v1096
    %1098 = vdwg.mxu0
    %v1099 = vand.u32 %v193, 4294901760
    %1100 = vmatprep.subr.mxu0 %v1099
    %v1101 = vand.u32 %v192, 4294901760
    %1102 = vmatpush1.msra.mxu0 %v1101
    %v1103 = vand.u32 %v197, 4294901760
    %1104 = vmatprep.subr.mxu0 %v1103
    %v1105 = vand.u32 %v196, 4294901760
    %1106 = vmatpush1.msra.mxu0 %v1105
    %v1107 = vand.u32 %v201, 4294901760
    %1108 = vmatprep.subr.mxu0 %v1107
    %v1109 = vand.u32 %v200, 4294901760
    %1110 = vmatpush1.msra.mxu0 %v1109
    %v1111 = vand.u32 %v205, 4294901760
    %1112 = vmatprep.subr.mxu0 %v1111
    %v1113 = vand.u32 %v204, 4294901760
    %1114 = vmatpush1.msra.mxu0 %v1113
    %v1115 = vand.u32 %v227, 4294901760
    %1116 = vmatprep.subr.mxu0 %v1115
    %v1117 = vand.u32 %v224, 4294901760
    %1118 = vmatpush1.msra.mxu0 %v1117
    %1119 = vmatprep.subr.mxu0 0.0
    %1120 = vmatpush1.msra.mxu0 0.0
    %1121 = vmatprep.subr.mxu0 0.0
    %1122 = vmatpush1.msra.mxu0 0.0
    %1123 = vmatprep.subr.mxu0 0.0
    %1124 = vmatpush1.msra.mxu0 0.0
    %1125 = vmatprep.subr.mxu0 0.0
    %1126 = vmatpush1.msra.mxu0 0.0
    %1127 = vmatprep.subr.mxu0 0.0
    %1128 = vmatpush1.msra.mxu0 0.0
    %1129 = vmatprep.subr.mxu0 0.0
    %1130 = vmatpush1.msra.mxu0 0.0
    %1131 = vmatprep.subr.mxu0 0.0
    %1132 = vmatpush1.msra.mxu0 0.0
    %1133 = vmatprep.subr.mxu0 0.0
    %1134 = vmatpush1.msra.mxu0 0.0
    %1135 = vmatprep.subr.mxu0 0.0
    %1136 = vmatpush1.msra.mxu0 0.0
    %1137 = vmatprep.subr.mxu0 0.0
    %1138 = vmatpush1.msra.mxu0 0.0
    %1139 = vmatprep.subr.mxu0 0.0
    %1140 = vmatpush1.msra.mxu0 0.0
    %1141 = vmatprep.subr.mxu0 0.0
    %1142 = vmatpush1.msra.mxu0 0.0
    %1143 = vmatprep.subr.mxu0 0.0
    %1144 = vmatpush1.msra.mxu0 0.0
    %1145 = vmatprep.subr.mxu0 0.0
    %1146 = vmatpush1.msra.mxu0 0.0
    %1147 = vmatprep.subr.mxu0 0.0
    %1148 = vmatpush1.msra.mxu0 0.0
    %1149 = vmatprep.subr.mxu0 0.0
    %1150 = vmatpush1.msra.mxu0 0.0
    %1151 = vmatprep.subr.mxu0 0.0
    %1152 = vmatpush1.msra.mxu0 0.0
    %1153 = vmatprep.subr.mxu0 0.0
    %1154 = vmatpush1.msra.mxu0 0.0
    %1155 = vmatprep.subr.mxu0 0.0
    %1156 = vmatpush1.msra.mxu0 0.0
    %1157 = vmatprep.subr.mxu0 0.0
    %1158 = vmatpush1.msra.mxu0 0.0
    %1159 = vmatprep.subr.mxu0 0.0
    %1160 = vmatpush1.msra.mxu0 0.0
    %1161 = vmatprep.subr.mxu0 0.0
    %1162 = vmatpush1.msra.mxu0 0.0
    %1163 = vmatprep.subr.mxu0 0.0
    %1164 = vmatpush1.msra.mxu0 0.0
    %1165 = vmatprep.subr.mxu0 0.0
    %1166 = vmatpush1.msra.mxu0 0.0
    %1167 = vmatprep.subr.mxu0 0.0
    %1168 = vmatpush1.msra.mxu0 0.0
    %1169 = vmatprep.subr.mxu0 0.0
    %1170 = vmatpush1.msra.mxu0 0.0
    %1171 = vmatprep.subr.mxu0 0.0
    %1172 = vmatpush1.msra.mxu0 0.0
    %1173 = vmatprep.mubr.f32.mxu0 0.0
    %v1174 = vand.u32 %v215, 4294901760
    %v1175 = vsub.f32 %v215, %v1174
    %v1176 = vand.u32 %v1175, 4294901760
    %1177 = vmatmul.mubr.f32.gmra.mrb[0].mxu0 %v1176
    %v1178 = vpop.f32.mrb[0].mxu0
    %v1179 = vadd.f32 %v1095, %v1178
    %v1180 = vpop.f32.mrb[0].mxu0
    %v1181 = vadd.f32 %v1097, %v1180
    %1182 = vdwg.mxu0
    %v1183 = vand.u32 %v193, 4294901760
    %v1184 = vsub.f32 %v193, %v1183
    %v1185 = vand.u32 %v1184, 4294901760
    %1186 = vmatprep.subr.mxu0 %v1185
    %v1187 = vand.u32 %v192, 4294901760
    %v1188 = vsub.f32 %v192, %v1187
    %v1189 = vand.u32 %v1188, 4294901760
    %1190 = vmatpush1.msra.mxu0 %v1189
    %v1191 = vand.u32 %v197, 4294901760
    %v1192 = vsub.f32 %v197, %v1191
    %v1193 = vand.u32 %v1192, 4294901760
    %1194 = vmatprep.subr.mxu0 %v1193
    %v1195 = vand.u32 %v196, 4294901760
    %v1196 = vsub.f32 %v196, %v1195
    %v1197 = vand.u32 %v1196, 4294901760
    %1198 = vmatpush1.msra.mxu0 %v1197
    %v1199 = vand.u32 %v201, 4294901760
    %v1200 = vsub.f32 %v201, %v1199
    %v1201 = vand.u32 %v1200, 4294901760
    %1202 = vmatprep.subr.mxu0 %v1201
    %v1203 = vand.u32 %v200, 4294901760
    %v1204 = vsub.f32 %v200, %v1203
    %v1205 = vand.u32 %v1204, 4294901760
    %1206 = vmatpush1.msra.mxu0 %v1205
    %v1207 = vand.u32 %v205, 4294901760
    %v1208 = vsub.f32 %v205, %v1207
    %v1209 = vand.u32 %v1208, 4294901760
    %1210 = vmatprep.subr.mxu0 %v1209
    %v1211 = vand.u32 %v204, 4294901760
    %v1212 = vsub.f32 %v204, %v1211
    %v1213 = vand.u32 %v1212, 4294901760
    %1214 = vmatpush1.msra.mxu0 %v1213
    %v1215 = vand.u32 %v227, 4294901760
    %v1216 = vsub.f32 %v227, %v1215
    %v1217 = vand.u32 %v1216, 4294901760
    %1218 = vmatprep.subr.mxu0 %v1217
    %v1219 = vand.u32 %v224, 4294901760
    %v1220 = vsub.f32 %v224, %v1219
    %v1221 = vand.u32 %v1220, 4294901760
    %1222 = vmatpush1.msra.mxu0 %v1221
    %1223 = vmatprep.subr.mxu0 0.0
    %1224 = vmatpush1.msra.mxu0 0.0
    %1225 = vmatprep.subr.mxu0 0.0
    %1226 = vmatpush1.msra.mxu0 0.0
    %1227 = vmatprep.subr.mxu0 0.0
    %1228 = vmatpush1.msra.mxu0 0.0
    %1229 = vmatprep.subr.mxu0 0.0
    %1230 = vmatpush1.msra.mxu0 0.0
    %1231 = vmatprep.subr.mxu0 0.0
    %1232 = vmatpush1.msra.mxu0 0.0
    %1233 = vmatprep.subr.mxu0 0.0
    %1234 = vmatpush1.msra.mxu0 0.0
    %1235 = vmatprep.subr.mxu0 0.0
    %1236 = vmatpush1.msra.mxu0 0.0
    %1237 = vmatprep.subr.mxu0 0.0
    %1238 = vmatpush1.msra.mxu0 0.0
    %1239 = vmatprep.subr.mxu0 0.0
    %1240 = vmatpush1.msra.mxu0 0.0
    %1241 = vmatprep.subr.mxu0 0.0
    %1242 = vmatpush1.msra.mxu0 0.0
    %1243 = vmatprep.subr.mxu0 0.0
    %1244 = vmatpush1.msra.mxu0 0.0
    %1245 = vmatprep.subr.mxu0 0.0
    %1246 = vmatpush1.msra.mxu0 0.0
    %1247 = vmatprep.subr.mxu0 0.0
    %1248 = vmatpush1.msra.mxu0 0.0
    %1249 = vmatprep.subr.mxu0 0.0
    %1250 = vmatpush1.msra.mxu0 0.0
    %1251 = vmatprep.subr.mxu0 0.0
    %1252 = vmatpush1.msra.mxu0 0.0
    %1253 = vmatprep.subr.mxu0 0.0
    %1254 = vmatpush1.msra.mxu0 0.0
    %1255 = vmatprep.subr.mxu0 0.0
    %1256 = vmatpush1.msra.mxu0 0.0
    %1257 = vmatprep.subr.mxu0 0.0
    %1258 = vmatpush1.msra.mxu0 0.0
    %1259 = vmatprep.subr.mxu0 0.0
    %1260 = vmatpush1.msra.mxu0 0.0
    %1261 = vmatprep.subr.mxu0 0.0
    %1262 = vmatpush1.msra.mxu0 0.0
    %1263 = vmatprep.subr.mxu0 0.0
    %1264 = vmatpush1.msra.mxu0 0.0
    %1265 = vmatprep.subr.mxu0 0.0
    %1266 = vmatpush1.msra.mxu0 0.0
    %1267 = vmatprep.subr.mxu0 0.0
    %1268 = vmatpush1.msra.mxu0 0.0
    %1269 = vmatprep.subr.mxu0 0.0
    %1270 = vmatpush1.msra.mxu0 0.0
    %1271 = vmatprep.subr.mxu0 0.0
    %1272 = vmatpush1.msra.mxu0 0.0
    %1273 = vmatprep.subr.mxu0 0.0
    %1274 = vmatpush1.msra.mxu0 0.0
    %1275 = vmatprep.subr.mxu0 0.0
    %1276 = vmatpush1.msra.mxu0 0.0
    %1277 = vmatprep.mubr.f32.mxu0 0.0
    %v1278 = vand.u32 %v215, 4294901760
    %1279 = vmatmul.mubr.f32.gmra.mrb[0].mxu0 %v1278
    %v1280 = vpop.f32.mrb[0].mxu0
    %v1281 = vadd.f32 %v1179, %v1280
    %v1282 = vpop.f32.mrb[0].mxu0
    %v1283 = vadd.f32 %v1181, %v1282
    %1284 = vdwg.mxu0
    %v1285 = vand.u32 %v193, 4294901760
    %1286 = vmatprep.subr.mxu0 %v1285
    %v1287 = vand.u32 %v192, 4294901760
    %1288 = vmatpush1.msra.mxu0 %v1287
    %v1289 = vand.u32 %v197, 4294901760
    %1290 = vmatprep.subr.mxu0 %v1289
    %v1291 = vand.u32 %v196, 4294901760
    %1292 = vmatpush1.msra.mxu0 %v1291
    %v1293 = vand.u32 %v201, 4294901760
    %1294 = vmatprep.subr.mxu0 %v1293
    %v1295 = vand.u32 %v200, 4294901760
    %1296 = vmatpush1.msra.mxu0 %v1295
    %v1297 = vand.u32 %v205, 4294901760
    %1298 = vmatprep.subr.mxu0 %v1297
    %v1299 = vand.u32 %v204, 4294901760
    %1300 = vmatpush1.msra.mxu0 %v1299
    %v1301 = vand.u32 %v227, 4294901760
    %1302 = vmatprep.subr.mxu0 %v1301
    %v1303 = vand.u32 %v224, 4294901760
    %1304 = vmatpush1.msra.mxu0 %v1303
    %1305 = vmatprep.subr.mxu0 0.0
    %1306 = vmatpush1.msra.mxu0 0.0
    %1307 = vmatprep.subr.mxu0 0.0
    %1308 = vmatpush1.msra.mxu0 0.0
    %1309 = vmatprep.subr.mxu0 0.0
    %1310 = vmatpush1.msra.mxu0 0.0
    %1311 = vmatprep.subr.mxu0 0.0
    %1312 = vmatpush1.msra.mxu0 0.0
    %1313 = vmatprep.subr.mxu0 0.0
    %1314 = vmatpush1.msra.mxu0 0.0
    %1315 = vmatprep.subr.mxu0 0.0
    %1316 = vmatpush1.msra.mxu0 0.0
    %1317 = vmatprep.subr.mxu0 0.0
    %1318 = vmatpush1.msra.mxu0 0.0
    %1319 = vmatprep.subr.mxu0 0.0
    %1320 = vmatpush1.msra.mxu0 0.0
    %1321 = vmatprep.subr.mxu0 0.0
    %1322 = vmatpush1.msra.mxu0 0.0
    %1323 = vmatprep.subr.mxu0 0.0
    %1324 = vmatpush1.msra.mxu0 0.0
    %1325 = vmatprep.subr.mxu0 0.0
    %1326 = vmatpush1.msra.mxu0 0.0
    %1327 = vmatprep.subr.mxu0 0.0
    %1328 = vmatpush1.msra.mxu0 0.0
    %1329 = vmatprep.subr.mxu0 0.0
    %1330 = vmatpush1.msra.mxu0 0.0
    %1331 = vmatprep.subr.mxu0 0.0
    %1332 = vmatpush1.msra.mxu0 0.0
    %1333 = vmatprep.subr.mxu0 0.0
    %1334 = vmatpush1.msra.mxu0 0.0
    %1335 = vmatprep.subr.mxu0 0.0
    %1336 = vmatpush1.msra.mxu0 0.0
    %1337 = vmatprep.subr.mxu0 0.0
    %1338 = vmatpush1.msra.mxu0 0.0
    %1339 = vmatprep.subr.mxu0 0.0
    %1340 = vmatpush1.msra.mxu0 0.0
    %1341 = vmatprep.subr.mxu0 0.0
    %1342 = vmatpush1.msra.mxu0 0.0
    %1343 = vmatprep.subr.mxu0 0.0
    %1344 = vmatpush1.msra.mxu0 0.0
    %1345 = vmatprep.subr.mxu0 0.0
    %1346 = vmatpush1.msra.mxu0 0.0
    %1347 = vmatprep.subr.mxu0 0.0
    %1348 = vmatpush1.msra.mxu0 0.0
    %1349 = vmatprep.subr.mxu0 0.0
    %1350 = vmatpush1.msra.mxu0 0.0
    %1351 = vmatprep.subr.mxu0 0.0
    %1352 = vmatpush1.msra.mxu0 0.0
    %1353 = vmatprep.subr.mxu0 0.0
    %1354 = vmatpush1.msra.mxu0 0.0
    %1355 = vmatprep.subr.mxu0 0.0
    %1356 = vmatpush1.msra.mxu0 0.0
    %1357 = vmatprep.subr.mxu0 0.0
    %1358 = vmatpush1.msra.mxu0 0.0
    %1359 = vmatprep.mubr.f32.mxu0 0.0
    %v1360 = vand.u32 %v215, 4294901760
    %1361 = vmatmul.mubr.f32.gmra.mrb[0].mxu0 %v1360
    %v1362 = vpop.f32.mrb[0].mxu0
    %v1363 = vadd.f32 %v1281, %v1362
    %v1364 = vpop.f32.mrb[0].mxu0
    %v1365 = vadd.f32 %v1283, %v1364
    %1366 = vdwg.mxu0
    %1367 = vst [vmem:[#allocation5] sm:$0xff] %v794
    %1368 = vst [vmem:[#allocation5 + $0x8] sm:$0xff] %v796
    %1369 = vst [vmem:[#allocation5 + $0x10] sm:$0xff] %v1363
    %1370 = vst [vmem:[#allocation5 + $0x18] sm:$0xff] %v1365
    // Predicated region
    $region18: #{tpu_custom_call.1} parent=1 // pred_check
      _
    $region19: #{tpu_custom_call.1} parent=1 // pred_check_branch
      %1372 = sbr.rel (0) target = $region21
    $region20: #{tpu_custom_call.1} parent=1 // pred_region
      %s1374 = ssub.s32 512, 512
      %1375 = vsyncadd [#allocation4], %s1374
      %s1377 = sshll.u32 [#allocation5], 4
      %s1378 = int_to_ptr.vmem [resolvable:$true] %s1377
      %1380 = dma.vmem_to_hbm [thread:$0]  %s1378, 512, %s3, [#allocation4]
    $region21: #{tpu_custom_call.1} parent=1 // pred_fallthru
      _
    // Predicated region
    $region22: #{tpu_custom_call.1} parent=1 // pred_check
      _
    $region23: #{tpu_custom_call.1} parent=1 // pred_check_branch
      %1382 = sbr.rel (0) target = $region25
    $region24: #{tpu_custom_call.1} parent=1 // pred_region
      %1383 = dma.done [#allocation4], 512
    $region25: #{tpu_custom_call.1} parent=1 // pred_fallthru
      _
    %1384 = vsyncpa [#allocation3], 1
    %1385 = vsyncpa [#allocation4], 1

</llo_original>
